<compile_context>
chip_gen: v7x
topology: tpu7x:2x2x1
jax: 0.10.0
libtpu: 0.0.40
codegen_flags: <defaults>
</compile_context>

<pallas_src>
import functools

import jax
import jax.numpy as jnp
from jax import lax
from jax.experimental import pallas as pl
from jax.experimental.pallas import tpu as pltpu


_LANE_CHUNK = 512          # feature-axis chunk width (multiple of 128 lanes)
_MAX_CHUNKS = 16           # cap on unrolled chunk count for very large D


def _pick_chunk(d):
    chunk = _LANE_CHUNK
    if d > chunk * _MAX_CHUNKS:
        chunk = ((d + _MAX_CHUNKS - 1) // _MAX_CHUNKS + 127) // 128 * 128
    return chunk


def _chip_profile():
    """(tensorcores/chip, VMEM tile budget, scoped-VMEM limit) by TPU gen."""
    kind = ""
    try:
        kind = jax.devices()[0].device_kind.lower()
    except Exception:
        pass
    if "v7" in kind or "7x" in kind:
        # v7x: 2 TCs per chip but only 64 MiB VMEM per TC.
        return 2, 32 * 1024 * 1024, 48 * 1024 * 1024
    # v5e / v6e: single TensorCore, 128 MiB physical VMEM.
    return 1, 48 * 1024 * 1024, 100 * 1024 * 1024


def _triplet_kernel(a_ref, p_ref, n_ref, o_ref, *,
                    margin, eps, batch, tile_b, chunk):
    s = pl.program_id(0)          # shard axis ("parallel": 2 TCs on v7x)
    k = pl.program_id(1)          # batch-tile axis ("arbitrary": carried sum)

    # Init the resident per-shard accumulator block on the first tile.
    @pl.when(k == 0)
    def _():
        o_ref[...] = jnp.zeros_like(o_ref)

    tb, d = a_ref.shape

    # Lane-chunked reductions over the feature axis: f32 upcasts and the five
    # product temporaries stay chunk-sized in VMEM instead of full-tile-sized.
    # Offsets are static (D is compile-time), so this is a fully unrolled loop
    # whose partial sums form a serial dependence chain.
    zero = jnp.zeros((tb, 1), jnp.float32)
    dot_ap, dot_an, sq_a, sq_p, sq_n = zero, zero, zero, zero, zero
    for off in range(0, d, chunk):
        size = min(chunk, d - off)
        a = a_ref[:, off:off + size].astype(jnp.float32)
        p = p_ref[:, off:off + size].astype(jnp.float32)
        n = n_ref[:, off:off + size].astype(jnp.float32)
        dot_ap = dot_ap + jnp.sum(a * p, axis=1, keepdims=True)
        dot_an = dot_an + jnp.sum(a * n, axis=1, keepdims=True)
        sq_a = sq_a + jnp.sum(a * a, axis=1, keepdims=True)
        sq_p = sq_p + jnp.sum(p * p, axis=1, keepdims=True)
        sq_n = sq_n + jnp.sum(n * n, axis=1, keepdims=True)

    # cos(x,y) = x.y / max(||x||*||y||, eps)
    #          = x.y * min(rsqrt(||x||^2) * rsqrt(||y||^2), 1/eps)
    # rsqrt goes to the EUP slot (no divides); multiplying inverse norms
    # instead of squaring the norm product avoids f32 overflow.
    inv_a = lax.rsqrt(sq_a)
    inv_p = lax.rsqrt(sq_p)
    inv_n = lax.rsqrt(sq_n)
    inv_eps = 1.0 / eps
    cos_pos = dot_ap * jnp.minimum(inv_a * inv_p, inv_eps)
    cos_neg = dot_an * jnp.minimum(inv_a * inv_n, inv_eps)

    # (1 - cos_pos) - (1 - cos_neg) + margin == cos_neg - cos_pos + margin
    losses = jnp.maximum(cos_neg - cos_pos + margin, 0.0)        # [tb, 1]

    # Mask rows past the true batch size.  Ragged edge / redundant clamped
    # blocks read unspecified data; jnp.where does not propagate the unselected
    # branch, so any NaN/garbage in those rows is zeroed before the sum.
    g = s * pl.num_programs(1) + k
    row = g * tile_b + lax.broadcasted_iota(jnp.int32, (tb, 1), 0)
    losses = jnp.where(row < batch, losses, 0.0)

    # Accumulate the tile SUM (mean taken in the wrapper with the true B).
    o_ref[...] += jnp.sum(losses)


def triplet_loss(anchor, positive, negative, margin, eps=1e-6, tile_b=None):
    """anchor/positive/negative: [B, D] arrays (f32 or bf16). Returns f32 scalar."""
    assert anchor.shape == positive.shape == negative.shape
    assert anchor.dtype == positive.dtype == negative.dtype
    B, D = anchor.shape
    itemsize = jnp.dtype(anchor.dtype).itemsize

    num_tc, vmem_budget, vmem_limit = _chip_profile()
    chunk = _pick_chunk(D)

    # Sublane alignment: 8 rows for 4-byte, 16 for 2-byte, 32 for 1-byte dtypes
    # (packed sublanes -> no masked/relayouted loads on narrow dtypes).
    row_align = {4: 8, 2: 16, 1: 32}.get(itemsize, 8)

    if tile_b is None:
        # Per-row VMEM cost: 3 inputs x 2 pipeline buffers (HBM dtype) plus
        # ~8 chunk-wide f32 intermediates inside the kernel body.
        per_row = 3 * 2 * D * itemsize + 8 * min(D, chunk) * 4
        t = max(row_align, (vmem_budget // per_row) // row_align * row_align)
    else:
        t = max(row_align, -(-int(tile_b) // row_align) * row_align)

    if num_tc >= 2:
        # Keep >= 2 batch tiles so both TensorCores get work (v7x).
        half = -(-B // 2)                               # ceil(B / 2)
        half = -(-half // row_align) * row_align        # sublane multiple
        t = min(t, max(half, row_align))

    if t >= B:
        t = B            # full-dim block: always layout-legal, no masked rows
    tile_b = t

    num_tiles = pl.cdiv(B, tile_b)
    num_shards = 2 if (num_tc >= 2 and num_tiles >= 2) else 1
    tiles_per_shard = pl.cdiv(num_tiles, num_shards)

    # Clamp the block index so a redundant trailing grid step (odd tile count
    # split across 2 shards) re-reads a valid block; its rows are >= B and are
    # zeroed by the in-kernel mask.
    def idx_map(s, k):
        return (jnp.minimum(s * tiles_per_shard + k, num_tiles - 1), 0)

    # Deeper buffering only when tiles are tiny AND the per-shard grid is long
    # enough for a third buffer to hide DMA issue latency.
    block_bytes = tile_b * D * itemsize
    if block_bytes < (64 << 10) and tiles_per_shard >= 3:
        in_spec = pl.BlockSpec((tile_b, D), idx_map,
                               pipeline_mode=pl.Buffered(3))
    else:
        in_spec = pl.BlockSpec((tile_b, D), idx_map)

    kernel = functools.partial(_triplet_kernel, margin=float(margin),
                               eps=float(eps), batch=B, tile_b=tile_b,
                               chunk=chunk)

    out = pl.pallas_call(
        kernel,
        out_shape=jax.ShapeDtypeStruct((num_shards * 8, 128), jnp.float32),
        grid_spec=pltpu.PrefetchScalarGridSpec(
            num_scalar_prefetch=0,
            grid=(num_shards, tiles_per_shard),
            in_specs=[in_spec, in_spec, in_spec],
            out_specs=pl.BlockSpec((8, 128), lambda s, k: (s, 0)),
        ),
        compiler_params=pltpu.CompilerParams(
            dimension_semantics=("parallel", "arbitrary"),
            vmem_limit_bytes=vmem_limit),
        cost_estimate=pl.CostEstimate(
            flops=10 * B * D + 24 * B,
            transcendentals=3 * B,
            bytes_accessed=3 * B * D * itemsize + num_shards * 8 * 128 * 4),
    )(anchor, positive, negative)

    # Each shard's (8,128) output block holds one replicated partial sum.
    partials = out[0::8, 0]
    return jnp.sum(partials) / B


def _ref(a, p, n, margin, eps=1e-6):
    def cos(x, y):
        num = jnp.sum(x * y, axis=1)
        den = jnp.maximum(jnp.linalg.norm(x, axis=1) * jnp.linalg.norm(y, axis=1), eps)
        return num / den

    dp = 1.0 - cos(a, p)
    dn = 1.0 - cos(a, n)
    return jnp.mean(jnp.maximum(dp - dn + margin, 0.0))


if __name__ == "__main__":
    margin = 0.5
    k1, k2, k3, k4, k5, k6 = jax.random.split(jax.random.PRNGKey(0), 6)

    # Case 1: small ragged shapes (no padding anywhere; full-dim blocks).
    B, D = 10, 48
    a = jax.random.normal(k1, (B, D), jnp.float32)
    p = jax.random.normal(k2, (B, D), jnp.float32)
    n = jax.random.normal(k3, (B, D), jnp.float32)
    loss = triplet_loss(a, p, n, margin)
    jax.block_until_ready(loss)
    exp = _ref(a, p, n, margin)
    assert jnp.allclose(loss, exp, atol=1e-5, rtol=1e-5), (loss, exp)

    # Case 2: multi-tile grid with a small forced tile (exercises ragged last
    # batch tile + Buffered(3) deeper pipelining path).
    B2, D2 = 50, 200
    a2 = jax.random.normal(k4, (B2, D2), jnp.float32)
    p2 = jax.random.normal(k5, (B2, D2), jnp.float32)
    n2 = jax.random.normal(k6, (B2, D2), jnp.float32)
    loss2 = triplet_loss(a2, p2, n2, margin, tile_b=8)
    jax.block_until_ready(loss2)
    exp2 = _ref(a2, p2, n2, margin)
    assert jnp.allclose(loss2, exp2, atol=1e-5, rtol=1e-5), (loss2, exp2)

    # Case 3: bf16 inputs in HBM (half the DMA traffic; f32 math in-kernel;
    # tile rounded up to the 16-row packed-sublane multiple).
    a2b, p2b, n2b = (x.astype(jnp.bfloat16) for x in (a2, p2, n2))
    loss3 = triplet_loss(a2b, p2b, n2b, margin, tile_b=8)
    jax.block_until_ready(loss3)
    exp3 = _ref(a2b.astype(jnp.float32), p2b.astype(jnp.float32),
                n2b.astype(jnp.float32), margin)
    assert jnp.allclose(loss3, exp3, atol=1e-4, rtol=1e-4), (loss3, exp3)

    print("KERNEL_OK")
</pallas_src>

<mosaic_0001>
module attributes {stable_mosaic.version = 11 : i64} {
  func.func @_triplet_kernel(%arg0: i32, %arg1: i32, %arg2: memref<10x48xf32, #tpu.memory_space<vmem>>, %arg3: memref<10x48xf32, #tpu.memory_space<vmem>>, %arg4: memref<10x48xf32, #tpu.memory_space<vmem>>, %arg5: memref<8x128xf32, #tpu.memory_space<vmem>>) attributes {dimension_semantics = [#tpu.dimension_semantics<parallel>, #tpu.dimension_semantics<arbitrary>], iteration_bounds = array<i64: 1, 1>, scalar_prefetch = 0 : i64, scratch_operands = 0 : i64, tpu.core_type = #tpu.core_type<tc>, window_params = [{transform_indices = @transform_0, window_bounds = array<i64: 10, 48>}, {transform_indices = @transform_1, window_bounds = array<i64: 10, 48>}, {transform_indices = @transform_2, window_bounds = array<i64: 10, 48>}, {transform_indices = @transform_3, window_bounds = array<i64: 8, 128>}]} {
    %c0_i32 = arith.constant 0 : i32
    %0 = arith.cmpi eq, %arg1, %c0_i32 : i32
    %1 = arith.extui %0 : i1 to i32
    %c0_i32_0 = arith.constant 0 : i32
    %2 = arith.cmpi ne, %1, %c0_i32_0 : i32
    scf.if %2 {
      %cst_22 = arith.constant 0.000000e+00 : f32
      %61 = vector.broadcast %cst_22 : f32 to vector<8x128xf32>
      %c0_23 = arith.constant 0 : index
      %c0_24 = arith.constant 0 : index
      %62 = vector.load %arg5[%c0_23, %c0_24] : memref<8x128xf32, #tpu.memory_space<vmem>>, vector<8x128xf32>
      tpu.vector_store %arg5[%c0_23, %c0_24], %61 {strides = array<i32>} : memref<8x128xf32, #tpu.memory_space<vmem>>, vector<8x128xf32>,
    } else {
    }
    %cst = arith.constant 0.000000e+00 : f32
    %3 = vector.broadcast %cst : f32 to vector<10x1xf32>
    %c0 = arith.constant 0 : index
    %c0_1 = arith.constant 0 : index
    %4 = vector.load %arg2[%c0, %c0_1] : memref<10x48xf32, #tpu.memory_space<vmem>>, vector<10x48xf32>
    %c0_2 = arith.constant 0 : index
    %c0_3 = arith.constant 0 : index
    %5 = vector.load %arg3[%c0_2, %c0_3] : memref<10x48xf32, #tpu.memory_space<vmem>>, vector<10x48xf32>
    %c0_4 = arith.constant 0 : index
    %c0_5 = arith.constant 0 : index
    %6 = vector.load %arg4[%c0_4, %c0_5] : memref<10x48xf32, #tpu.memory_space<vmem>>, vector<10x48xf32>
    %7 = arith.mulf %4, %5 : vector<10x48xf32>
    %cst_6 = arith.constant dense<0.000000e+00> : vector<10xf32>
    %8 = vector.multi_reduction <add>, %7, %cst_6 [1] : vector<10x48xf32> to vector<10xf32>
    %9 = vector.shape_cast %8 : vector<10xf32> to vector<10x1xf32>
    %10 = arith.addf %3, %9 : vector<10x1xf32>
    %11 = arith.mulf %4, %6 : vector<10x48xf32>
    %cst_7 = arith.constant dense<0.000000e+00> : vector<10xf32>
    %12 = vector.multi_reduction <add>, %11, %cst_7 [1] : vector<10x48xf32> to vector<10xf32>
    %13 = vector.shape_cast %12 : vector<10xf32> to vector<10x1xf32>
    %14 = arith.addf %3, %13 : vector<10x1xf32>
    %15 = arith.mulf %4, %4 : vector<10x48xf32>
    %cst_8 = arith.constant dense<0.000000e+00> : vector<10xf32>
    %16 = vector.multi_reduction <add>, %15, %cst_8 [1] : vector<10x48xf32> to vector<10xf32>
    %17 = vector.shape_cast %16 : vector<10xf32> to vector<10x1xf32>
    %18 = arith.addf %3, %17 : vector<10x1xf32>
    %19 = arith.mulf %5, %5 : vector<10x48xf32>
    %cst_9 = arith.constant dense<0.000000e+00> : vector<10xf32>
    %20 = vector.multi_reduction <add>, %19, %cst_9 [1] : vector<10x48xf32> to vector<10xf32>
    %21 = vector.shape_cast %20 : vector<10xf32> to vector<10x1xf32>
    %22 = arith.addf %3, %21 : vector<10x1xf32>
    %23 = arith.mulf %6, %6 : vector<10x48xf32>
    %cst_10 = arith.constant dense<0.000000e+00> : vector<10xf32>
    %24 = vector.multi_reduction <add>, %23, %cst_10 [1] : vector<10x48xf32> to vector<10xf32>
    %25 = vector.shape_cast %24 : vector<10xf32> to vector<10x1xf32>
    %26 = arith.addf %3, %25 : vector<10x1xf32>
    %27 = math.rsqrt %18 : vector<10x1xf32>
    %28 = math.rsqrt %22 : vector<10x1xf32>
    %29 = math.rsqrt %26 : vector<10x1xf32>
    %30 = arith.mulf %27, %28 : vector<10x1xf32>
    %cst_11 = arith.constant 1.000000e+06 : f32
    %31 = vector.broadcast %cst_11 : f32 to vector<10x1xf32>
    %32 = arith.minimumf %30, %31 : vector<10x1xf32>
    %33 = arith.mulf %10, %32 : vector<10x1xf32>
    %34 = arith.mulf %27, %29 : vector<10x1xf32>
    %cst_12 = arith.constant 1.000000e+06 : f32
    %35 = vector.broadcast %cst_12 : f32 to vector<10x1xf32>
    %36 = arith.minimumf %34, %35 : vector<10x1xf32>
    %37 = arith.mulf %14, %36 : vector<10x1xf32>
    %38 = arith.subf %37, %33 : vector<10x1xf32>
    %cst_13 = arith.constant 5.000000e-01 : f32
    %39 = vector.broadcast %cst_13 : f32 to vector<10x1xf32>
    %40 = arith.addf %38, %39 : vector<10x1xf32>
    %cst_14 = arith.constant 0.000000e+00 : f32
    %41 = vector.broadcast %cst_14 : f32 to vector<10x1xf32>
    %42 = arith.maximumf %40, %41 : vector<10x1xf32>
    %c1_i32 = arith.constant 1 : i32
    %43 = arith.muli %arg0, %c1_i32 : i32
    %44 = arith.addi %43, %arg1 : i32
    %c10_i32 = arith.constant 10 : i32
    %45 = arith.muli %44, %c10_i32 : i32
    %46 = tpu.iota {dimensions = array<i32: 0>} : vector<10x1xi32>
    %47 = vector.broadcast %45 : i32 to vector<10x1xi32>
    %48 = arith.addi %47, %46 : vector<10x1xi32>
    %c10_i32_15 = arith.constant 10 : i32
    %49 = vector.broadcast %c10_i32_15 : i32 to vector<10x1xi32>
    %50 = arith.cmpi slt, %48, %49 : vector<10x1xi32>
    %cst_16 = arith.constant 0.000000e+00 : f32
    %51 = vector.broadcast %cst_16 : f32 to vector<10x1xf32>
    %52 = arith.select %50, %42, %51 : vector<10x1xi1>, vector<10x1xf32>
    %c0_17 = arith.constant 0 : index
    %c0_18 = arith.constant 0 : index
    %53 = vector.load %arg5[%c0_17, %c0_18] : memref<8x128xf32, #tpu.memory_space<vmem>>, vector<8x128xf32>
    %54 = vector.shape_cast %52 : vector<10x1xf32> to vector<1x10x1xf32>
    %cst_19 = arith.constant dense<0.000000e+00> : vector<1xf32>
    %55 = vector.multi_reduction <add>, %54, %cst_19 [1, 2] : vector<1x10x1xf32> to vector<1xf32>
    %56 = vector.shape_cast %55 : vector<1xf32> to vector<1x1x1xf32>
    %57 = vector.extract %56[0, 0, 0] : f32 from vector<1x1x1xf32>
    %58 = vector.broadcast %57 : f32 to vector<8x128xf32>
    %59 = arith.addf %53, %58 : vector<8x128xf32>
    %c0_20 = arith.constant 0 : index
    %c0_21 = arith.constant 0 : index
    %60 = vector.load %arg5[%c0_20, %c0_21] : memref<8x128xf32, #tpu.memory_space<vmem>>, vector<8x128xf32>
    tpu.vector_store %arg5[%c0_20, %c0_21], %59 {strides = array<i32>} : memref<8x128xf32, #tpu.memory_space<vmem>>, vector<8x128xf32>,
    return
  }
  func.func @transform_0(%arg0: i32, %arg1: i32) -> (i32, i32) {
    %c1_i32 = arith.constant 1 : i32
    %0 = arith.muli %arg0, %c1_i32 : i32
    %1 = arith.addi %0, %arg1 : i32
    %c0_i32 = arith.constant 0 : i32
    %2 = arith.minsi %1, %c0_i32 : i32
    %c0_i32_0 = arith.constant 0 : i32
    %c0_i32_1 = arith.constant 0 : i32
    return %2, %c0_i32_0 : i32, i32
  }
  func.func @transform_1(%arg0: i32, %arg1: i32) -> (i32, i32) {
    %c1_i32 = arith.constant 1 : i32
    %0 = arith.muli %arg0, %c1_i32 : i32
    %1 = arith.addi %0, %arg1 : i32
    %c0_i32 = arith.constant 0 : i32
    %2 = arith.minsi %1, %c0_i32 : i32
    %c0_i32_0 = arith.constant 0 : i32
    %c0_i32_1 = arith.constant 0 : i32
    return %2, %c0_i32_0 : i32, i32
  }
  func.func @transform_2(%arg0: i32, %arg1: i32) -> (i32, i32) {
    %c1_i32 = arith.constant 1 : i32
    %0 = arith.muli %arg0, %c1_i32 : i32
    %1 = arith.addi %0, %arg1 : i32
    %c0_i32 = arith.constant 0 : i32
    %2 = arith.minsi %1, %c0_i32 : i32
    %c0_i32_0 = arith.constant 0 : i32
    %c0_i32_1 = arith.constant 0 : i32
    return %2, %c0_i32_0 : i32, i32
  }
  func.func @transform_3(%arg0: i32, %arg1: i32) -> (i32, i32) {
    %c0_i32 = arith.constant 0 : i32
    %c0_i32_0 = arith.constant 0 : i32
    return %arg0, %c0_i32 : i32, i32
  }
}

</mosaic_0001>

<llo_original>
// kernel: tpu_custom_call.1
$region0: #{tpu_custom_call.1}
  #allocation0 [shape = 'u32[]', space=smem, size = 0x4, offset = 0x4, fixed_abs, tag = 'smem constant byte address 0x4 - core index']
  #allocation1 [shape = 'u32[144,128]{1,0:T(1,128)}', space=vmem, size = 0x12000, scoped, tag = 'internal scratch']
  %s0 = inlined_call_operand.hbm [shape: f32[10,48], index: 0, kind: input, shape index: {}]
  %s1 = inlined_call_operand.hbm [shape: f32[10,48], index: 1, kind: input, shape index: {}]
  %s2 = inlined_call_operand.hbm [shape: f32[10,48], index: 2, kind: input, shape index: {}]
  %s3 = inlined_call_operand.hbm [shape: f32[8,128], index: 3, kind: output, shape index: {}]
  %s4 = sld [smem:[#allocation0]]
  $region38: #{tpu_custom_call.1} parent=0
    _
  %s6 = ssub.s32 1, %s4
  %s7 = scalar_select 0, %s6, %s4
  $region1: #{tpu_custom_call.1} parent=0
    #allocation2 [shape = 'u8[8192]{0}', space=vmem, size = 0x2000, scoped, tag = 'input window, operand 0, single buffered']
    #allocation3 [shape = 's32[1]{0}', space=sflag, size = 0x4, scoped, tag = 'scoped memory for tpu_custom_call.1']
    #allocation4 [shape = 's32[1]{0}', space=sflag, size = 0x4, scoped, tag = 'scoped memory for tpu_custom_call.1']
    #allocation5 [shape = 'u8[8192]{0}', space=vmem, size = 0x2000, scoped, tag = 'input window, operand 1, single buffered']
    #allocation6 [shape = 's32[1]{0}', space=sflag, size = 0x4, scoped, tag = 'scoped memory for tpu_custom_call.1']
    #allocation7 [shape = 'u8[8192]{0}', space=vmem, size = 0x2000, scoped, tag = 'input window, operand 2, single buffered']
    #allocation8 [shape = 'u8[4096]{0}', space=vmem, size = 0x1000, scoped, tag = 'output window, operand 0, single buffered']
    %8 = vsyncpa [#allocation3], 0
    %9 = vsyncpa [#allocation6], 0
    %10 = vsyncpa [#allocation4], 0
    // Predicated region
    $region2: #{tpu_custom_call.1} parent=1 // pred_check
      _
    $region3: #{tpu_custom_call.1} parent=1 // pred_check_branch
      %12 = sbr.rel (0) target = $region5
    $region4: #{tpu_custom_call.1} parent=1 // pred_region
      %s13 = sadd.s32 0, 0
      %p14 = scmp.lt.s32.totalorder %s13, 0
      %s15 = scalar_select %p14, %s13, 0
      %s16 = smul.u32 2, %s15
      %s18 = ssub.s32 256, 256
      %19 = vsyncadd [#allocation3], %s18
      %s20 = smul.addr %s16, 128
      %s21 = scalar_lea.hbm %s0, %s20
      %s22 = sshll.u32 [#allocation2], 4
      %s23 = int_to_ptr.vmem [resolvable:$true] %s22
      %28 = dma.hbm_to_vmem [thread:$0]  %s21, 256, %s23, [#allocation3], 128, 128, 8
    $region5: #{tpu_custom_call.1} parent=1 // pred_fallthru
      _
    // Predicated region
    $region6: #{tpu_custom_call.1} parent=1 // pred_check
      _
    $region7: #{tpu_custom_call.1} parent=1 // pred_check_branch
      %30 = sbr.rel (0) target = $region9
    $region8: #{tpu_custom_call.1} parent=1 // pred_region
      %s31 = sadd.s32 0, 0
      %p32 = scmp.lt.s32.totalorder %s31, 0
      %s33 = scalar_select %p32, %s31, 0
      %s34 = smul.u32 2, %s33
      %s36 = ssub.s32 256, 256
      %37 = vsyncadd [#allocation6], %s36
      %s38 = smul.addr %s34, 128
      %s39 = scalar_lea.hbm %s1, %s38
      %s40 = sshll.u32 [#allocation5], 4
      %s41 = int_to_ptr.vmem [resolvable:$true] %s40
      %46 = dma.hbm_to_vmem [thread:$0]  %s39, 256, %s41, [#allocation6], 128, 128, 8
    $region9: #{tpu_custom_call.1} parent=1 // pred_fallthru
      _
    // Predicated region
    $region10: #{tpu_custom_call.1} parent=1 // pred_check
      _
    $region11: #{tpu_custom_call.1} parent=1 // pred_check_branch
      %48 = sbr.rel (0) target = $region13
    $region12: #{tpu_custom_call.1} parent=1 // pred_region
      %s49 = sadd.s32 0, 0
      %p50 = scmp.lt.s32.totalorder %s49, 0
      %s51 = scalar_select %p50, %s49, 0
      %s52 = smul.u32 2, %s51
      %s54 = ssub.s32 256, 256
      %55 = vsyncadd [#allocation6], %s54
      %s56 = smul.addr %s52, 128
      %s57 = scalar_lea.hbm %s2, %s56
      %s58 = sshll.u32 [#allocation7], 4
      %s59 = int_to_ptr.vmem [resolvable:$true] %s58
      %64 = dma.hbm_to_vmem [thread:$0]  %s57, 256, %s59, [#allocation6], 128, 128, 8
    $region13: #{tpu_custom_call.1} parent=1 // pred_fallthru
      _
    // Predicated region
    $region14: #{tpu_custom_call.1} parent=1 // pred_check
      _
    $region15: #{tpu_custom_call.1} parent=1 // pred_check_branch
      %66 = sbr.rel (0) target = $region17
    $region16: #{tpu_custom_call.1} parent=1 // pred_region
      %67 = dma.done [#allocation3], 256
    $region17: #{tpu_custom_call.1} parent=1 // pred_fallthru
      _
    // Predicated region
    $region18: #{tpu_custom_call.1} parent=1 // pred_check
      _
    $region19: #{tpu_custom_call.1} parent=1 // pred_check_branch
      %69 = sbr.rel (0) target = $region21
    $region20: #{tpu_custom_call.1} parent=1 // pred_region
      %70 = dma.done [#allocation6], 256
    $region21: #{tpu_custom_call.1} parent=1 // pred_fallthru
      _
    // Predicated region
    $region22: #{tpu_custom_call.1} parent=1 // pred_check
      _
    $region23: #{tpu_custom_call.1} parent=1 // pred_check_branch
      %72 = sbr.rel (0) target = $region25
    $region24: #{tpu_custom_call.1} parent=1 // pred_region
      %73 = dma.done [#allocation6], 256
    $region25: #{tpu_custom_call.1} parent=1 // pred_fallthru
      _
    %s74 = sadd.s32 0, 0
    %p75 = scmp.lt.s32.totalorder %s74, 0
    %s76 = scalar_select %p75, %s74, 0
    %s77 = smul.u32 2, %s76
    %s78 = sadd.s32 0, 0
    %p79 = scmp.lt.s32.totalorder %s78, 0
    %s80 = scalar_select %p79, %s78, 0
    %s81 = smul.u32 2, %s80
    %s82 = sadd.s32 0, 0
    %p83 = scmp.lt.s32.totalorder %s82, 0
    %s84 = scalar_select %p83, %s82, 0
    %s85 = smul.u32 2, %s84
    %p86 = scmp.eq.s32.totalorder 0, 0
    // Predicated region
    $region26: #{tpu_custom_call.1} parent=1 // pred_check
      %p87 = pneg %p86
    $region27: #{tpu_custom_call.1} parent=1 // pred_check_branch
      %89 = sbr.rel (%p87) target = $region29
    $region28: #{tpu_custom_call.1} parent=1 // pred_region
      %90 = vst [vmem:[#allocation8] sm:$0xff] 0.0
    $region29: #{tpu_custom_call.1} parent=1 // pred_fallthru
      _
    %v91 = vld [vmem:[#allocation2] sm:$0xff]
    %v92 = vld [vmem:[#allocation2 + $0x8] sm:$0x3]
    %v93 = vld [vmem:[#allocation5] sm:$0xff]
    %v94 = vld [vmem:[#allocation5 + $0x8] sm:$0x3]
    %v95 = vld [vmem:[#allocation7] sm:$0xff]
    %v96 = vld [vmem:[#allocation7 + $0x8] sm:$0x3]
    %v97 = vmul.f32 %v91, %v93
    %v98 = vmul.f32 %v92, %v94
    %vm99 = vcmask 392192
    %v100 = vsel %vm99, %v97, 0.0
    %101 = vadd.xlane.f32.xlu0 %v100
    %v102 = vpop.xlane.xlu0 %101
    %vm103 = vcmask 386048
    %v104 = vsel %vm103, %v98, 0.0
    %105 = vadd.xlane.f32.xlu0 %v104
    %v106 = vpop.xlane.xlu0 %105
    %v107 = vadd.f32 %v102, 0.0
    %v108 = vadd.f32 %v106, 0.0
    %v109 = vmul.f32 %v91, %v95
    %v110 = vmul.f32 %v92, %v96
    %v111 = vsel %vm99, %v109, 0.0
    %112 = vadd.xlane.f32.xlu0 %v111
    %v113 = vpop.xlane.xlu0 %112
    %v114 = vsel %vm103, %v110, 0.0
    %115 = vadd.xlane.f32.xlu0 %v114
    %v116 = vpop.xlane.xlu0 %115
    %v117 = vadd.f32 %v113, 0.0
    %v118 = vadd.f32 %v116, 0.0
    %v119 = vmul.f32 %v91, %v91
    %v120 = vmul.f32 %v92, %v92
    %v121 = vsel %vm99, %v119, 0.0
    %122 = vadd.xlane.f32.xlu0 %v121
    %v123 = vpop.xlane.xlu0 %122
    %v124 = vsel %vm103, %v120, 0.0
    %125 = vadd.xlane.f32.xlu0 %v124
    %v126 = vpop.xlane.xlu0 %125
    %v127 = vadd.f32 %v123, 0.0
    %v128 = vadd.f32 %v126, 0.0
    %v129 = vmul.f32 %v93, %v93
    %v130 = vmul.f32 %v94, %v94
    %v131 = vsel %vm99, %v129, 0.0
    %132 = vadd.xlane.f32.xlu0 %v131
    %v133 = vpop.xlane.xlu0 %132
    %v134 = vsel %vm103, %v130, 0.0
    %135 = vadd.xlane.f32.xlu0 %v134
    %v136 = vpop.xlane.xlu0 %135
    %v137 = vadd.f32 %v133, 0.0
    %v138 = vadd.f32 %v136, 0.0
    %v139 = vmul.f32 %v95, %v95
    %v140 = vmul.f32 %v96, %v96
    %v141 = vsel %vm99, %v139, 0.0
    %142 = vadd.xlane.f32.xlu0 %v141
    %v143 = vpop.xlane.xlu0 %142
    %v144 = vsel %vm103, %v140, 0.0
    %145 = vadd.xlane.f32.xlu0 %v144
    %v146 = vpop.xlane.xlu0 %145
    %v147 = vadd.f32 %v143, 0.0
    %v148 = vadd.f32 %v146, 0.0
    %v149 = vrsqrt.pop %v127
    %v150 = vrsqrt.pop %v128
    %v151 = vrsqrt.pop %v137
    %v152 = vrsqrt.pop %v138
    %v153 = vrsqrt.pop %v147
    %v154 = vrsqrt.pop %v148
    %v155 = vmul.f32 %v149, %v151
    %v156 = vmul.f32 %v150, %v152
    %v157 = vmin.f32 %v155, 1000000.0
    %v158 = vmin.f32 %v156, 1000000.0
    %v159 = vmul.f32 %v107, %v157
    %v160 = vmul.f32 %v108, %v158
    %v161 = vmul.f32 %v149, %v153
    %v162 = vmul.f32 %v150, %v154
    %v163 = vmin.f32 %v161, 1000000.0
    %v164 = vmin.f32 %v162, 1000000.0
    %v165 = vmul.f32 %v117, %v163
    %v166 = vmul.f32 %v118, %v164
    %v167 = vsub.f32 %v165, %v159
    %v168 = vsub.f32 %v166, %v160
    %v169 = vadd.f32 %v167, 0.5
    %v170 = vadd.f32 %v168, 0.5
    %v171 = vmax.f32 %v169, 0.0
    %v172 = vmax.f32 %v170, 0.0
    %s173 = sadd.s32 0, 0
    %s174 = smul.u32 %s173, 10
    %v175 = vlaneseq
    %v176 = vshrl.u32 %v175, 7
    %v177 = vadd.s32 %v176, 8
    %v178 = vstv %s174
    %v179 = vadd.s32 %v178, %v176
    %v180 = vadd.s32 %v178, %v177
    %vm181 = vcmp.lt.s32.totalorder %v179, 10
    %vm182 = vcmp.lt.s32.totalorder %v180, 10
    %v183 = vsel %vm181, %v171, 0.0
    %v184 = vsel %vm182, %v172, 0.0
    %v185 = vld [vmem:[#allocation8] sm:$0xff]
    %vm186 = vcmask 7168
    %v187 = vsel %vm186, %v183, 0.0
    %vm188 = vcmask 1024
    %v189 = vsel %vm188, %v184, 0.0
    %v190 = vadd.f32 %v187, %v189
    %191 = vadd.xlane.f32.xlu0 %v190
    %v192 = vpop.xlane.xlu0 %191
    %v193 = vrot.slane %v192, 4
    %v194 = vadd.f32 %v192, %v193
    %v195 = vrot.slane %v194, 2
    %v196 = vadd.f32 %v194, %v195
    %v197 = vrot.slane %v196, 1
    %v198 = vadd.f32 %v196, %v197
    %s199 = vtos %v198
    %v200 = vstv %s199
    %v201 = vadd.f32 %v185, %v200
    %202 = vst [vmem:[#allocation8] sm:$0xff] %v201
    // Predicated region
    $region30: #{tpu_custom_call.1} parent=1 // pred_check
      _
    $region31: #{tpu_custom_call.1} parent=1 // pred_check_branch
      %204 = sbr.rel (0) target = $region33
    $region32: #{tpu_custom_call.1} parent=1 // pred_region
      %s206 = ssub.s32 128, 128
      %207 = vsyncadd [#allocation4], %s206
      %s209 = sshll.u32 [#allocation8], 4
      %s210 = int_to_ptr.vmem [resolvable:$true] %s209
      %212 = dma.vmem_to_hbm [thread:$0]  %s210, 128, %s3, [#allocation4]
    $region33: #{tpu_custom_call.1} parent=1 // pred_fallthru
      _
    // Predicated region
    $region34: #{tpu_custom_call.1} parent=1 // pred_check
      _
    $region35: #{tpu_custom_call.1} parent=1 // pred_check_branch
      %214 = sbr.rel (0) target = $region37
    $region36: #{tpu_custom_call.1} parent=1 // pred_region
      %215 = dma.done [#allocation4], 128
    $region37: #{tpu_custom_call.1} parent=1 // pred_fallthru
      _
    %216 = vsyncpa [#allocation3], 1
    %217 = vsyncpa [#allocation6], 1
    %218 = vsyncpa [#allocation4], 1

</llo_original>
